<compile_context>
chip_gen: v7x
topology: tpu7x:2x2x1
jax: 0.10.0
libtpu: 0.0.40
codegen_flags: <defaults>
</compile_context>

<pallas_src>
import math

import jax
import jax.numpy as jnp
from jax.experimental import pallas as pl
from jax.experimental.pallas import tpu as pltpu


def make_actor_kernel(action_bound: float, n_actions: int):
    log_sqrt_2pi = math.log(math.sqrt(2.0 * math.pi))

    def actor_kernel(x_ref, w1_ref, b1_ref, w2_ref, b2_ref,
                     wh_ref, bh_ref, eps_ref, out_ref):
        # Layout: features on sublanes, batch on the 128-lane axis.
        x = x_ref[...].astype(jnp.bfloat16)                      # (n_states, bm)

        # fc1 -> sigmoid          (weights already bf16; accumulate in f32)
        h1 = jnp.dot(w1_ref[...], x,
                     preferred_element_type=jnp.float32) + b1_ref[...]
        h1 = jax.nn.sigmoid(h1)                                   # (H, bm) f32

        # fc2 -> sigmoid
        h2 = jnp.dot(w2_ref[...], h1.astype(jnp.bfloat16),
                     preferred_element_type=jnp.float32) + b2_ref[...]
        h2 = jax.nn.sigmoid(h2)                                   # (H, bm) f32

        # Fused head: [fc_mu ; fc_std] in one MXU pass.
        head = jnp.dot(wh_ref[...], h2.astype(jnp.bfloat16),
                       preferred_element_type=jnp.float32) + bh_ref[...]  # (2A, bm)
        mu = head[:n_actions, :]
        logits = head[n_actions:, :]

        # softmax over the action axis (axis 0 here == dim 1 of the (B, A)
        # reference layout). Sublane reductions over n_actions rows.
        m = jnp.max(logits, axis=0, keepdims=True)                # (1, bm)
        e = jnp.exp(logits - m)
        sum_e = jnp.sum(e, axis=0, keepdims=True)                 # (1, bm)
        std = e * pl.reciprocal(sum_e, approx=True)
        # Analytic log(std): one EUP log per column instead of per element,
        # and exact (no approx-reciprocal error in log_prob).
        log_std = (logits - m) - jnp.log(sum_e)

        # Normal(mu, std).rsample() with externally supplied eps ~ N(0, 1).
        eps = eps_ref[...]                                        # (A, bm)
        sample = mu + std * eps

        # Normal(mu, std).log_prob(sample): since sample - mu == std * eps,
        # the quadratic term reduces exactly to 0.5 * eps^2.
        log_prob = -0.5 * eps * eps - log_std - log_sqrt_2pi

        # tanh squash. NOTE: the reference applies tanh twice in the correction
        # term (torch.tanh(action) with action already = tanh(sample)); we
        # reproduce that exactly to keep forward-pass semantics.
        action = jnp.tanh(sample)
        log_prob = log_prob - jnp.log(1.0 - jnp.tanh(action) ** 2 + 1e-06)

        # Direct slab writes (no concatenate temporary); sublane-aligned slices.
        out_ref[:n_actions, :] = action * action_bound
        out_ref[n_actions:, :] = log_prob

    return actor_kernel


def _pick_bm(B: int) -> int:
    """Batch tile (lane) size: whole batch for small B (full-dim block is
    always legal), else 128-multiple tiles up to 2048 with >=2 grid steps so
    the parallel axis can shard across v7x's 2 TensorCores."""
    if B <= 512:
        return B
    bm = min(2048, ((pl.cdiv(B, 2) + 127) // 128) * 128)
    return max(128, bm)


def actor_forward(x, params, eps, action_bound, *, bm=None):
    """x: (B, n_states) f32, eps: (B, n_actions) f32.
    Returns (action, log_prob), each (B, n_actions) f32."""
    B, n_states = x.shape
    hidden = params["w1"].shape[0]
    n_actions = params["wmu"].shape[0]

    # Transposed compute layout: batch on the 128-lane axis.
    xt = x.T                                   # (n_states, B)
    epst = eps.T                               # (n_actions, B)

    # Fuse the two head layers into one matmul (done once in the wrapper).
    w_head = jnp.concatenate([params["wmu"], params["wstd"]], axis=0)   # (2A, H)
    b_head = jnp.concatenate([params["bmu"], params["bstd"]], axis=0)   # (2A, 1)

    # bf16 weights for the MXU (native on v6e/v7x, fine on v5e); biases f32.
    w1 = params["w1"].astype(jnp.bfloat16)
    w2 = params["w2"].astype(jnp.bfloat16)
    w_head = w_head.astype(jnp.bfloat16)

    if bm is None:
        bm = _pick_bm(B)
    grid = (pl.cdiv(B, bm),)

    batch_map = lambda i: (0, i)   # tile along the lane (batch) axis
    whole_map = lambda i: (0, 0)   # weights/biases resident, whole-array blocks

    kernel = make_actor_kernel(float(action_bound), n_actions)

    out = pl.pallas_call(
        kernel,
        out_shape=jax.ShapeDtypeStruct((2 * n_actions, B), jnp.float32),
        grid=grid,
        in_specs=[
            pl.BlockSpec((n_states, bm), batch_map),           # x tile (S, bm)
            pl.BlockSpec((hidden, n_states), whole_map),       # w1 (H, S)
            pl.BlockSpec((hidden, 1), whole_map),              # b1 (H, 1)
            pl.BlockSpec((hidden, hidden), whole_map),         # w2 (H, H)
            pl.BlockSpec((hidden, 1), whole_map),              # b2 (H, 1)
            pl.BlockSpec((2 * n_actions, hidden), whole_map),  # fused head W
            pl.BlockSpec((2 * n_actions, 1), whole_map),       # fused head b
            pl.BlockSpec((n_actions, bm), batch_map),          # eps tile (A, bm)
        ],
        out_specs=pl.BlockSpec((2 * n_actions, bm), batch_map),
        compiler_params=pltpu.CompilerParams(
            dimension_semantics=("parallel",),
            vmem_limit_bytes=32 * 1024 * 1024,
        ),
    )(xt, w1, params["b1"], w2, params["b2"], w_head, b_head, epst)

    action = out[:n_actions, :].T
    log_prob = out[n_actions:, :].T
    return action, log_prob


def actor_reference(x, params, eps, action_bound):
    """Pure-JAX f32 reference mirroring the PyTorch module exactly."""
    h1 = jax.nn.sigmoid(x @ params["w1"].T + params["b1"].T)
    h2 = jax.nn.sigmoid(h1 @ params["w2"].T + params["b2"].T)
    mu = h2 @ params["wmu"].T + params["bmu"].T
    std = jax.nn.softmax(h2 @ params["wstd"].T + params["bstd"].T, axis=-1)
    sample = mu + std * eps
    log_prob = (-0.5 * ((sample - mu) / std) ** 2 - jnp.log(std)
                - math.log(math.sqrt(2.0 * math.pi)))
    action = jnp.tanh(sample)
    log_prob = log_prob - jnp.log(1.0 - jnp.tanh(action) ** 2 + 1e-06)
    return action * action_bound, log_prob


def init_params(key, n_states, hidden, n_actions):
    """Deterministic synthetic weights (PyTorch-Linear-like uniform init).
    Weights stored in PyTorch layout (out_features, in_features); biases
    stored as (out_features, 1) columns for the batch-on-lanes layout."""
    ks = jax.random.split(key, 8)

    def lin(kw, kb, fan_in, fan_out):
        bound = 1.0 / math.sqrt(fan_in)
        w = jax.random.uniform(kw, (fan_out, fan_in), jnp.float32, -bound, bound)
        b = jax.random.uniform(kb, (fan_out, 1), jnp.float32, -bound, bound)
        return w, b

    w1, b1 = lin(ks[0], ks[1], n_states, hidden)
    w2, b2 = lin(ks[2], ks[3], hidden, hidden)
    wmu, bmu = lin(ks[4], ks[5], hidden, n_actions)
    wstd, bstd = lin(ks[6], ks[7], hidden, n_actions)
    return dict(w1=w1, b1=b1, w2=w2, b2=b2,
                wmu=wmu, bmu=bmu, wstd=wstd, bstd=bstd)


if __name__ == "__main__":
    # Small cfg consistent with the module: n_states=16, actor_hidden_dim=32,
    # n_actions=8, action_bound=2.0, batch=8.
    B, N_STATES, HIDDEN, N_ACTIONS = 8, 16, 32, 8
    ACTION_BOUND = 2.0

    key = jax.random.PRNGKey(0)
    k_params, k_x, k_eps = jax.random.split(key, 3)

    params = init_params(k_params, N_STATES, HIDDEN, N_ACTIONS)
    x = jax.random.normal(k_x, (B, N_STATES), dtype=jnp.float32)
    eps = jax.random.normal(k_eps, (B, N_ACTIONS), dtype=jnp.float32)

    action, log_prob = actor_forward(x, params, eps, ACTION_BOUND)
    jax.block_until_ready((action, log_prob))

    # Sanity checks.
    assert action.shape == (B, N_ACTIONS) and log_prob.shape == (B, N_ACTIONS)
    assert jnp.all(jnp.isfinite(action)) and jnp.all(jnp.isfinite(log_prob))
    assert jnp.all(jnp.abs(action) <= ACTION_BOUND + 1e-5)

    # Loose-tolerance comparison vs the f32 reference (kernel uses bf16 MXU
    # operands and an approx reciprocal in the softmax).
    ref_action, ref_log_prob = actor_reference(x, params, eps, ACTION_BOUND)
    assert jnp.allclose(action, ref_action, rtol=5e-2, atol=5e-2)
    assert jnp.allclose(log_prob, ref_log_prob, rtol=5e-2, atol=5e-2)

    print("KERNEL_OK")
</pallas_src>

<mosaic_0001>
module attributes {stable_mosaic.version = 11 : i64} {
  func.func @actor_kernel(%arg0: i32, %arg1: memref<16x8xf32, #tpu.memory_space<vmem>>, %arg2: memref<32x16xbf16, #tpu.memory_space<vmem>>, %arg3: memref<32x1xf32, #tpu.memory_space<vmem>>, %arg4: memref<32x32xbf16, #tpu.memory_space<vmem>>, %arg5: memref<32x1xf32, #tpu.memory_space<vmem>>, %arg6: memref<16x32xbf16, #tpu.memory_space<vmem>>, %arg7: memref<16x1xf32, #tpu.memory_space<vmem>>, %arg8: memref<8x8xf32, #tpu.memory_space<vmem>>, %arg9: memref<16x8xf32, #tpu.memory_space<vmem>>) attributes {dimension_semantics = [#tpu.dimension_semantics<parallel>], iteration_bounds = array<i64: 1>, scalar_prefetch = 0 : i64, scratch_operands = 0 : i64, tpu.core_type = #tpu.core_type<tc>, window_params = [{transform_indices = @transform_0, window_bounds = array<i64: 16, 8>}, {pipeline_mode = #tpu.pipeline_mode<synchronous>, transform_indices = @transform_1, window_bounds = array<i64: 32, 16>}, {pipeline_mode = #tpu.pipeline_mode<synchronous>, transform_indices = @transform_2, window_bounds = array<i64: 32, 1>}, {pipeline_mode = #tpu.pipeline_mode<synchronous>, transform_indices = @transform_3, window_bounds = array<i64: 32, 32>}, {pipeline_mode = #tpu.pipeline_mode<synchronous>, transform_indices = @transform_4, window_bounds = array<i64: 32, 1>}, {pipeline_mode = #tpu.pipeline_mode<synchronous>, transform_indices = @transform_5, window_bounds = array<i64: 16, 32>}, {pipeline_mode = #tpu.pipeline_mode<synchronous>, transform_indices = @transform_6, window_bounds = array<i64: 16, 1>}, {transform_indices = @transform_7, window_bounds = array<i64: 8, 8>}, {transform_indices = @transform_8, window_bounds = array<i64: 16, 8>}]} {
    %c0 = arith.constant 0 : index
    %c0_0 = arith.constant 0 : index
    %0 = vector.load %arg1[%c0, %c0_0] : memref<16x8xf32, #tpu.memory_space<vmem>>, vector<16x8xf32>
    %1 = arith.truncf %0 : vector<16x8xf32> to vector<16x8xbf16>
    %c0_1 = arith.constant 0 : index
    %c0_2 = arith.constant 0 : index
    %2 = vector.load %arg2[%c0_1, %c0_2] : memref<32x16xbf16, #tpu.memory_space<vmem>>, vector<32x16xbf16>
    %cst = arith.constant dense<0.000000e+00> : vector<32x8xf32>
    %3 = tpu.matmul %2, %1, %cst {dimension_numbers = #tpu.dot_dimension_numbers<[1], [0], [0], [1], [0, 0, 1, 1], [], []>} : vector<32x16xbf16>, vector<16x8xbf16>, vector<32x8xf32> -> vector<32x8xf32>
    %c0_3 = arith.constant 0 : index
    %c0_4 = arith.constant 0 : index
    %4 = vector.load %arg3[%c0_3, %c0_4] : memref<32x1xf32, #tpu.memory_space<vmem>>, vector<32x1xf32>
    %5 = vector.broadcast %4 : vector<32x1xf32> to vector<32x8xf32>
    %6 = arith.addf %3, %5 : vector<32x8xf32>
    %7 = arith.negf %6 : vector<32x8xf32>
    %8 = math.exp %7 : vector<32x8xf32>
    %cst_5 = arith.constant 1.000000e+00 : f32
    %9 = vector.broadcast %cst_5 : f32 to vector<32x8xf32>
    %10 = arith.addf %9, %8 : vector<32x8xf32>
    %11 = arith.divf %9, %10 : vector<32x8xf32>
    %c0_6 = arith.constant 0 : index
    %c0_7 = arith.constant 0 : index
    %12 = vector.load %arg4[%c0_6, %c0_7] : memref<32x32xbf16, #tpu.memory_space<vmem>>, vector<32x32xbf16>
    %13 = arith.truncf %11 : vector<32x8xf32> to vector<32x8xbf16>
    %cst_8 = arith.constant dense<0.000000e+00> : vector<32x8xf32>
    %14 = tpu.matmul %12, %13, %cst_8 {dimension_numbers = #tpu.dot_dimension_numbers<[1], [0], [0], [1], [0, 0, 1, 1], [], []>} : vector<32x32xbf16>, vector<32x8xbf16>, vector<32x8xf32> -> vector<32x8xf32>
    %c0_9 = arith.constant 0 : index
    %c0_10 = arith.constant 0 : index
    %15 = vector.load %arg5[%c0_9, %c0_10] : memref<32x1xf32, #tpu.memory_space<vmem>>, vector<32x1xf32>
    %16 = vector.broadcast %15 : vector<32x1xf32> to vector<32x8xf32>
    %17 = arith.addf %14, %16 : vector<32x8xf32>
    %18 = arith.negf %17 : vector<32x8xf32>
    %19 = math.exp %18 : vector<32x8xf32>
    %cst_11 = arith.constant 1.000000e+00 : f32
    %20 = vector.broadcast %cst_11 : f32 to vector<32x8xf32>
    %21 = arith.addf %20, %19 : vector<32x8xf32>
    %22 = arith.divf %20, %21 : vector<32x8xf32>
    %c0_12 = arith.constant 0 : index
    %c0_13 = arith.constant 0 : index
    %23 = vector.load %arg6[%c0_12, %c0_13] : memref<16x32xbf16, #tpu.memory_space<vmem>>, vector<16x32xbf16>
    %24 = arith.truncf %22 : vector<32x8xf32> to vector<32x8xbf16>
    %cst_14 = arith.constant dense<0.000000e+00> : vector<16x8xf32>
    %25 = tpu.matmul %23, %24, %cst_14 {dimension_numbers = #tpu.dot_dimension_numbers<[1], [0], [0], [1], [0, 0, 1, 1], [], []>} : vector<16x32xbf16>, vector<32x8xbf16>, vector<16x8xf32> -> vector<16x8xf32>
    %c0_15 = arith.constant 0 : index
    %c0_16 = arith.constant 0 : index
    %26 = vector.load %arg7[%c0_15, %c0_16] : memref<16x1xf32, #tpu.memory_space<vmem>>, vector<16x1xf32>
    %27 = vector.broadcast %26 : vector<16x1xf32> to vector<16x8xf32>
    %28 = arith.addf %25, %27 : vector<16x8xf32>
    %29 = vector.extract_strided_slice %28 {offsets = [0, 0], sizes = [8, 8], strides = [1, 1]} : vector<16x8xf32> to vector<8x8xf32>
    %30 = vector.extract_strided_slice %28 {offsets = [8, 0], sizes = [8, 8], strides = [1, 1]} : vector<16x8xf32> to vector<8x8xf32>
    %cst_17 = arith.constant dense<0xFF800000> : vector<8xf32>
    %31 = vector.multi_reduction <maximumf>, %30, %cst_17 [0] : vector<8x8xf32> to vector<8xf32>
    %32 = vector.shape_cast %31 : vector<8xf32> to vector<1x8xf32>
    %33 = vector.broadcast %32 : vector<1x8xf32> to vector<8x8xf32>
    %34 = arith.subf %30, %33 : vector<8x8xf32>
    %35 = math.exp %34 : vector<8x8xf32>
    %cst_18 = arith.constant dense<0.000000e+00> : vector<8xf32>
    %36 = vector.multi_reduction <add>, %35, %cst_18 [0] : vector<8x8xf32> to vector<8xf32>
    %37 = vector.shape_cast %36 : vector<8xf32> to vector<1x8xf32>
    %38 = tpu.reciprocal %37 {approx = true} : vector<1x8xf32> -> vector<1x8xf32>
    %39 = vector.broadcast %38 : vector<1x8xf32> to vector<8x8xf32>
    %40 = arith.mulf %35, %39 : vector<8x8xf32>
    %41 = vector.broadcast %32 : vector<1x8xf32> to vector<8x8xf32>
    %42 = arith.subf %30, %41 : vector<8x8xf32>
    %43 = math.log %37 : vector<1x8xf32>
    %44 = vector.broadcast %43 : vector<1x8xf32> to vector<8x8xf32>
    %45 = arith.subf %42, %44 : vector<8x8xf32>
    %c0_19 = arith.constant 0 : index
    %c0_20 = arith.constant 0 : index
    %46 = vector.load %arg8[%c0_19, %c0_20] : memref<8x8xf32, #tpu.memory_space<vmem>>, vector<8x8xf32>
    %47 = arith.mulf %40, %46 : vector<8x8xf32>
    %48 = arith.addf %29, %47 : vector<8x8xf32>
    %cst_21 = arith.constant -5.000000e-01 : f32
    %49 = vector.broadcast %cst_21 : f32 to vector<8x8xf32>
    %50 = arith.mulf %49, %46 : vector<8x8xf32>
    %51 = arith.mulf %50, %46 : vector<8x8xf32>
    %52 = arith.subf %51, %45 : vector<8x8xf32>
    %cst_22 = arith.constant 0.918938517 : f32
    %53 = vector.broadcast %cst_22 : f32 to vector<8x8xf32>
    %54 = arith.subf %52, %53 : vector<8x8xf32>
    %55 = math.tanh %48 : vector<8x8xf32>
    %56 = math.tanh %55 : vector<8x8xf32>
    %57 = arith.mulf %56, %56 : vector<8x8xf32>
    %cst_23 = arith.constant 1.000000e+00 : f32
    %58 = vector.broadcast %cst_23 : f32 to vector<8x8xf32>
    %59 = arith.subf %58, %57 : vector<8x8xf32>
    %cst_24 = arith.constant 9.99999997E-7 : f32
    %60 = vector.broadcast %cst_24 : f32 to vector<8x8xf32>
    %61 = arith.addf %59, %60 : vector<8x8xf32>
    %62 = math.log %61 : vector<8x8xf32>
    %63 = arith.subf %54, %62 : vector<8x8xf32>
    %cst_25 = arith.constant 2.000000e+00 : f32
    %64 = vector.broadcast %cst_25 : f32 to vector<8x8xf32>
    %65 = arith.mulf %55, %64 : vector<8x8xf32>
    %c0_26 = arith.constant 0 : index
    %c0_27 = arith.constant 0 : index
    %66 = vector.load %arg9[%c0_26, %c0_27] : memref<16x8xf32, #tpu.memory_space<vmem>>, vector<8x8xf32>
    tpu.vector_store %arg9[%c0_26, %c0_27], %65 {strides = array<i32>} : memref<16x8xf32, #tpu.memory_space<vmem>>, vector<8x8xf32>,
    %c8 = arith.constant 8 : index
    %c0_28 = arith.constant 0 : index
    %67 = vector.load %arg9[%c8, %c0_28] : memref<16x8xf32, #tpu.memory_space<vmem>>, vector<8x8xf32>
    tpu.vector_store %arg9[%c8, %c0_28], %63 {strides = array<i32>} : memref<16x8xf32, #tpu.memory_space<vmem>>, vector<8x8xf32>,
    return
  }
  func.func @transform_0(%arg0: i32) -> (i32, i32) {
    %c0_i32 = arith.constant 0 : i32
    %c0_i32_0 = arith.constant 0 : i32
    return %c0_i32, %arg0 : i32, i32
  }
  func.func @transform_1(%arg0: i32) -> (i32, i32) {
    %c0_i32 = arith.constant 0 : i32
    %c0_i32_0 = arith.constant 0 : i32
    %c0_i32_1 = arith.constant 0 : i32
    return %c0_i32, %c0_i32_0 : i32, i32
  }
  func.func @transform_2(%arg0: i32) -> (i32, i32) {
    %c0_i32 = arith.constant 0 : i32
    %c0_i32_0 = arith.constant 0 : i32
    %c0_i32_1 = arith.constant 0 : i32
    return %c0_i32, %c0_i32_0 : i32, i32
  }
  func.func @transform_3(%arg0: i32) -> (i32, i32) {
    %c0_i32 = arith.constant 0 : i32
    %c0_i32_0 = arith.constant 0 : i32
    %c0_i32_1 = arith.constant 0 : i32
    return %c0_i32, %c0_i32_0 : i32, i32
  }
  func.func @transform_4(%arg0: i32) -> (i32, i32) {
    %c0_i32 = arith.constant 0 : i32
    %c0_i32_0 = arith.constant 0 : i32
    %c0_i32_1 = arith.constant 0 : i32
    return %c0_i32, %c0_i32_0 : i32, i32
  }
  func.func @transform_5(%arg0: i32) -> (i32, i32) {
    %c0_i32 = arith.constant 0 : i32
    %c0_i32_0 = arith.constant 0 : i32
    %c0_i32_1 = arith.constant 0 : i32
    return %c0_i32, %c0_i32_0 : i32, i32
  }
  func.func @transform_6(%arg0: i32) -> (i32, i32) {
    %c0_i32 = arith.constant 0 : i32
    %c0_i32_0 = arith.constant 0 : i32
    %c0_i32_1 = arith.constant 0 : i32
    return %c0_i32, %c0_i32_0 : i32, i32
  }
  func.func @transform_7(%arg0: i32) -> (i32, i32) {
    %c0_i32 = arith.constant 0 : i32
    %c0_i32_0 = arith.constant 0 : i32
    return %c0_i32, %arg0 : i32, i32
  }
  func.func @transform_8(%arg0: i32) -> (i32, i32) {
    %c0_i32 = arith.constant 0 : i32
    %c0_i32_0 = arith.constant 0 : i32
    return %c0_i32, %arg0 : i32, i32
  }
}

</mosaic_0001>

<llo_original>
// kernel: tpu_custom_call.1
$region0: #{tpu_custom_call.1}
  #allocation0 [shape = 'u32[]', space=smem, size = 0x4, offset = 0x4, fixed_abs, tag = 'smem constant byte address 0x4 - core index']
  #allocation1 [shape = 'u32[144,128]{1,0:T(1,128)}', space=vmem, size = 0x12000, scoped, tag = 'internal scratch']
  %s0 = inlined_call_operand.vmem [shape: f32[16,8], index: 0, kind: input, shape index: {}]
  %s1 = inlined_call_operand.vmem [shape: bf16[32,16], index: 1, kind: input, shape index: {}]
  %s2 = inlined_call_operand.vmem [shape: f32[32,1], index: 2, kind: input, shape index: {}]
  %s3 = inlined_call_operand.vmem [shape: bf16[32,32], index: 3, kind: input, shape index: {}]
  %s4 = inlined_call_operand.vmem [shape: f32[32,1], index: 4, kind: input, shape index: {}]
  %s5 = inlined_call_operand.vmem [shape: bf16[16,32], index: 5, kind: input, shape index: {}]
  %s6 = inlined_call_operand.vmem [shape: f32[16,1], index: 6, kind: input, shape index: {}]
  %s7 = inlined_call_operand.vmem [shape: f32[8,8], index: 7, kind: input, shape index: {}]
  %s8 = inlined_call_operand.vmem [shape: f32[16,8], index: 8, kind: output, shape index: {}]
  %s9 = sld [smem:[#allocation0]]
  $region42: #{tpu_custom_call.1} parent=0
    _
  %s11 = ssub.s32 1, %s9
  %s12 = scalar_select 0, %s11, %s9
  // Predicated region
  $region2: #{tpu_custom_call.1} parent=0 // pred_check
    _
  $region3: #{tpu_custom_call.1} parent=0 // pred_check_branch
    %14 = sbr.rel (0) target = $region5
  $region4: #{tpu_custom_call.1} parent=0 // pred_region
    _
  $region5: #{tpu_custom_call.1} parent=0 // pred_fallthru
    _
  // Predicated region
  $region6: #{tpu_custom_call.1} parent=0 // pred_check
    _
  $region7: #{tpu_custom_call.1} parent=0 // pred_check_branch
    %16 = sbr.rel (0) target = $region9
  $region8: #{tpu_custom_call.1} parent=0 // pred_region
    _
  $region9: #{tpu_custom_call.1} parent=0 // pred_fallthru
    _
  // Predicated region
  $region10: #{tpu_custom_call.1} parent=0 // pred_check
    _
  $region11: #{tpu_custom_call.1} parent=0 // pred_check_branch
    %18 = sbr.rel (0) target = $region13
  $region12: #{tpu_custom_call.1} parent=0 // pred_region
    _
  $region13: #{tpu_custom_call.1} parent=0 // pred_fallthru
    _
  // Predicated region
  $region14: #{tpu_custom_call.1} parent=0 // pred_check
    _
  $region15: #{tpu_custom_call.1} parent=0 // pred_check_branch
    %20 = sbr.rel (0) target = $region17
  $region16: #{tpu_custom_call.1} parent=0 // pred_region
    _
  $region17: #{tpu_custom_call.1} parent=0 // pred_fallthru
    _
  // Predicated region
  $region18: #{tpu_custom_call.1} parent=0 // pred_check
    _
  $region19: #{tpu_custom_call.1} parent=0 // pred_check_branch
    %22 = sbr.rel (0) target = $region21
  $region20: #{tpu_custom_call.1} parent=0 // pred_region
    _
  $region21: #{tpu_custom_call.1} parent=0 // pred_fallthru
    _
  // Predicated region
  $region22: #{tpu_custom_call.1} parent=0 // pred_check
    _
  $region23: #{tpu_custom_call.1} parent=0 // pred_check_branch
    %24 = sbr.rel (0) target = $region25
  $region24: #{tpu_custom_call.1} parent=0 // pred_region
    _
  $region25: #{tpu_custom_call.1} parent=0 // pred_fallthru
    _
  // Predicated region
  $region26: #{tpu_custom_call.1} parent=0 // pred_check
    _
  $region27: #{tpu_custom_call.1} parent=0 // pred_check_branch
    %26 = sbr.rel (0) target = $region29
  $region28: #{tpu_custom_call.1} parent=0 // pred_region
    _
  $region29: #{tpu_custom_call.1} parent=0 // pred_fallthru
    _
  // Predicated region
  $region30: #{tpu_custom_call.1} parent=0 // pred_check
    _
  $region31: #{tpu_custom_call.1} parent=0 // pred_check_branch
    %28 = sbr.rel (0) target = $region33
  $region32: #{tpu_custom_call.1} parent=0 // pred_region
    _
  $region33: #{tpu_custom_call.1} parent=0 // pred_fallthru
    _
  %v30 = vld [vmem:[%s0] sm:$0xff]
  %v31 = vld [vmem:[%s0 + $0x8] sm:$0xff]
  %v32 = vpack.c.bf16 %v31, %v30
  %v33 = vld [vmem:[%s1] sm:$0xf]
  %v34 = vld [vmem:[%s1 + $0x4] sm:$0xf]
  %v35 = vld [vmem:[%s1 + $0x8] sm:$0xf]
  %v36 = vld [vmem:[%s1 + $0xc] sm:$0xf]
  %v37 = vld [vmem:[%s2] sm:$0xff]
  %v38 = vld [vmem:[%s2 + $0x8] sm:$0xff]
  %v39 = vld [vmem:[%s2 + $0x10] sm:$0xff]
  %v40 = vld [vmem:[%s2 + $0x18] sm:$0xff]
  %42 = vset.pattern.permute.xlu0 0
  %43 = vperm.xlu0 %42, %v37
  %v44 = vpop.permute.xlu0 %43
  %47 = vset.pattern.permute.xlu0 0
  %48 = vperm.xlu0 %47, %v38
  %v49 = vpop.permute.xlu0 %48
  %52 = vset.pattern.permute.xlu0 0
  %53 = vperm.xlu0 %52, %v39
  %v54 = vpop.permute.xlu0 %53
  %57 = vset.pattern.permute.xlu0 0
  %58 = vperm.xlu0 %57, %v40
  %v59 = vpop.permute.xlu0 %58
  %v65 = vunpack.c.l.b16 %v33
  %v66 = vunpack.c.l.b16 %v34
  %v67 = vunpack.c.l.b16 %v35
  %v68 = vunpack.c.l.b16 %v36
  %v69 = vpack.c.b16 %v66, %v65
  %v70 = vpack.c.b16 %v68, %v67
  %vm71 = vcmask 130048
  %v73 = vsel %vm71, %v69, 0
  %v76 = vsel %vm71, %v70, 0
  %78 = vmatprep.subr.bf16.mxu0 0
  %79 = vmatpush1.bf16.msra.mxu0 %v32
  %80 = vmatprep.subr.bf16.mxu0 0
  %81 = vmatpush1.bf16.msra.mxu0 0
  %82 = vmatprep.subr.bf16.mxu0 0
  %83 = vmatpush1.bf16.msra.mxu0 0
  %84 = vmatprep.subr.bf16.mxu0 0
  %85 = vmatpush1.bf16.msra.mxu0 0
  %86 = vmatprep.subr.bf16.mxu0 0
  %87 = vmatpush1.bf16.msra.mxu0 0
  %88 = vmatprep.subr.bf16.mxu0 0
  %89 = vmatpush1.bf16.msra.mxu0 0
  %90 = vmatprep.subr.bf16.mxu0 0
  %91 = vmatpush1.bf16.msra.mxu0 0
  %92 = vmatprep.subr.bf16.mxu0 0
  %93 = vmatpush1.bf16.msra.mxu0 0
  %94 = vmatprep.subr.bf16.mxu0 0
  %95 = vmatpush1.bf16.msra.mxu0 0
  %96 = vmatprep.subr.bf16.mxu0 0
  %97 = vmatpush1.bf16.msra.mxu0 0
  %98 = vmatprep.subr.bf16.mxu0 0
  %99 = vmatpush1.bf16.msra.mxu0 0
  %100 = vmatprep.subr.bf16.mxu0 0
  %101 = vmatpush1.bf16.msra.mxu0 0
  %102 = vmatprep.subr.bf16.mxu0 0
  %103 = vmatpush1.bf16.msra.mxu0 0
  %104 = vmatprep.subr.bf16.mxu0 0
  %105 = vmatpush1.bf16.msra.mxu0 0
  %106 = vmatprep.subr.bf16.mxu0 0
  %107 = vmatpush1.bf16.msra.mxu0 0
  %108 = vmatprep.subr.bf16.mxu0 0
  %109 = vmatpush1.bf16.msra.mxu0 0
  %110 = vmatprep.mubr.bf16.mxu0 0
  %111 = vmatmul.mubr.bf16.gmra.mrb[0].mxu0 %v73
  %v112 = vpop.f32.mrb[0].mxu0
  %v113 = vadd.f32 %v44, %v112
  %v114 = vpop.f32.mrb[0].mxu0
  %v115 = vpop.f32.mrb[0].mxu0
  %v116 = vadd.f32 %v49, %v115
  %v117 = vpop.f32.mrb[0].mxu0
  %118 = vmatprep.mubr.bf16.mxu0 0
  %119 = vmatmul.mubr.bf16.gmra.mrb[0].mxu0 %v76
  %v120 = vpop.f32.mrb[0].mxu0
  %v121 = vadd.f32 %v54, %v120
  %v122 = vpop.f32.mrb[0].mxu0
  %v123 = vpop.f32.mrb[0].mxu0
  %v124 = vadd.f32 %v59, %v123
  %v125 = vpop.f32.mrb[0].mxu0
  %126 = vdwg.mxu0
  %v127 = vxor.u32 %v113, 2147483648
  %v128 = vxor.u32 %v116, 2147483648
  %v129 = vxor.u32 %v121, 2147483648
  %v130 = vxor.u32 %v124, 2147483648
  %v131 = vmul.f32 %v127, 1.442695
  %v132 = vpow.pop %v131
  %v133 = vmul.f32 %v128, 1.442695
  %v134 = vpow.pop %v133
  %v135 = vmul.f32 %v129, 1.442695
  %v136 = vpow.pop %v135
  %v137 = vmul.f32 %v130, 1.442695
  %v138 = vpow.pop %v137
  %v139 = vadd.f32 %v132, 1.0
  %v140 = vadd.f32 %v134, 1.0
  %v141 = vadd.f32 %v136, 1.0
  %v142 = vadd.f32 %v138, 1.0
  %v143 = vrcp.pop %v139
  %v144 = vmul.f32 1.0, %v143
  %v145 = vrcp.pop %v140
  %v146 = vmul.f32 1.0, %v145
  %v147 = vrcp.pop %v141
  %v148 = vmul.f32 1.0, %v147
  %v149 = vrcp.pop %v142
  %v150 = vmul.f32 1.0, %v149
  %v151 = vld [vmem:[%s3] sm:$0xf]
  %v152 = vld [vmem:[%s3 + $0x4] sm:$0xf]
  %v153 = vld [vmem:[%s3 + $0x8] sm:$0xf]
  %v154 = vld [vmem:[%s3 + $0xc] sm:$0xf]
  %v155 = vpack.c.bf16 %v146, %v144
  %v156 = vpack.c.bf16 %v150, %v148
  %v157 = vld [vmem:[%s4] sm:$0xff]
  %v158 = vld [vmem:[%s4 + $0x8] sm:$0xff]
  %v159 = vld [vmem:[%s4 + $0x10] sm:$0xff]
  %v160 = vld [vmem:[%s4 + $0x18] sm:$0xff]
  %162 = vset.pattern.permute.xlu0 0
  %163 = vperm.xlu0 %162, %v157
  %v164 = vpop.permute.xlu0 %163
  %167 = vset.pattern.permute.xlu0 0
  %168 = vperm.xlu0 %167, %v158
  %v169 = vpop.permute.xlu0 %168
  %172 = vset.pattern.permute.xlu0 0
  %173 = vperm.xlu0 %172, %v159
  %v174 = vpop.permute.xlu0 %173
  %177 = vset.pattern.permute.xlu0 0
  %178 = vperm.xlu0 %177, %v160
  %v179 = vpop.permute.xlu0 %178
  %v185 = vunpack.c.l.b16 %v151
  %v186 = vunpack.c.l.b16 %v152
  %v187 = vunpack.c.l.b16 %v153
  %v188 = vunpack.c.l.b16 %v154
  %v189 = vpack.c.b16 %v186, %v185
  %v190 = vpack.c.b16 %v188, %v187
  %vm191 = vcmask 261120
  %v193 = vsel %vm191, %v189, 0
  %v196 = vsel %vm191, %v190, 0
  %198 = vmatprep.subr.bf16.mxu0 0
  %199 = vmatpush1.bf16.msra.mxu0 %v155
  %200 = vmatprep.subr.bf16.mxu0 0
  %201 = vmatpush1.bf16.msra.mxu0 %v156
  %202 = vmatprep.subr.bf16.mxu0 0
  %203 = vmatpush1.bf16.msra.mxu0 0
  %204 = vmatprep.subr.bf16.mxu0 0
  %205 = vmatpush1.bf16.msra.mxu0 0
  %206 = vmatprep.subr.bf16.mxu0 0
  %207 = vmatpush1.bf16.msra.mxu0 0
  %208 = vmatprep.subr.bf16.mxu0 0
  %209 = vmatpush1.bf16.msra.mxu0 0
  %210 = vmatprep.subr.bf16.mxu0 0
  %211 = vmatpush1.bf16.msra.mxu0 0
  %212 = vmatprep.subr.bf16.mxu0 0
  %213 = vmatpush1.bf16.msra.mxu0 0
  %214 = vmatprep.subr.bf16.mxu0 0
  %215 = vmatpush1.bf16.msra.mxu0 0
  %216 = vmatprep.subr.bf16.mxu0 0
  %217 = vmatpush1.bf16.msra.mxu0 0
  %218 = vmatprep.subr.bf16.mxu0 0
  %219 = vmatpush1.bf16.msra.mxu0 0
  %220 = vmatprep.subr.bf16.mxu0 0
  %221 = vmatpush1.bf16.msra.mxu0 0
  %222 = vmatprep.subr.bf16.mxu0 0
  %223 = vmatpush1.bf16.msra.mxu0 0
  %224 = vmatprep.subr.bf16.mxu0 0
  %225 = vmatpush1.bf16.msra.mxu0 0
  %226 = vmatprep.subr.bf16.mxu0 0
  %227 = vmatpush1.bf16.msra.mxu0 0
  %228 = vmatprep.subr.bf16.mxu0 0
  %229 = vmatpush1.bf16.msra.mxu0 0
  %230 = vmatprep.mubr.bf16.mxu0 0
  %231 = vmatmul.mubr.bf16.gmra.mrb[0].mxu0 %v193
  %v232 = vpop.f32.mrb[0].mxu0
  %v233 = vadd.f32 %v164, %v232
  %v234 = vpop.f32.mrb[0].mxu0
  %v235 = vpop.f32.mrb[0].mxu0
  %v236 = vadd.f32 %v169, %v235
  %v237 = vpop.f32.mrb[0].mxu0
  %238 = vmatprep.mubr.bf16.mxu0 0
  %239 = vmatmul.mubr.bf16.gmra.mrb[0].mxu0 %v196
  %v240 = vpop.f32.mrb[0].mxu0
  %v241 = vadd.f32 %v174, %v240
  %v242 = vpop.f32.mrb[0].mxu0
  %v243 = vpop.f32.mrb[0].mxu0
  %v244 = vadd.f32 %v179, %v243
  %v245 = vpop.f32.mrb[0].mxu0
  %246 = vdwg.mxu0
  %v247 = vxor.u32 %v233, 2147483648
  %v248 = vxor.u32 %v236, 2147483648
  %v249 = vxor.u32 %v241, 2147483648
  %v250 = vxor.u32 %v244, 2147483648
  %v251 = vmul.f32 %v247, 1.442695
  %v252 = vpow.pop %v251
  %v253 = vmul.f32 %v248, 1.442695
  %v254 = vpow.pop %v253
  %v255 = vmul.f32 %v249, 1.442695
  %v256 = vpow.pop %v255
  %v257 = vmul.f32 %v250, 1.442695
  %v258 = vpow.pop %v257
  %v259 = vadd.f32 %v252, 1.0
  %v260 = vadd.f32 %v254, 1.0
  %v261 = vadd.f32 %v256, 1.0
  %v262 = vadd.f32 %v258, 1.0
  %v263 = vrcp.pop %v259
  %v264 = vmul.f32 1.0, %v263
  %v265 = vrcp.pop %v260
  %v266 = vmul.f32 1.0, %v265
  %v267 = vrcp.pop %v261
  %v268 = vmul.f32 1.0, %v267
  %v269 = vrcp.pop %v262
  %v270 = vmul.f32 1.0, %v269
  %v271 = vld [vmem:[%s5] sm:$0xf]
  %v272 = vld [vmem:[%s5 + $0x4] sm:$0xf]
  %v273 = vpack.c.bf16 %v266, %v264
  %v274 = vpack.c.bf16 %v270, %v268
  %v275 = vld [vmem:[%s6] sm:$0xff]
  %v276 = vld [vmem:[%s6 + $0x8] sm:$0xff]
  %278 = vset.pattern.permute.xlu0 0
  %279 = vperm.xlu0 %278, %v275
  %v280 = vpop.permute.xlu0 %279
  %283 = vset.pattern.permute.xlu0 0
  %284 = vperm.xlu0 %283, %v276
  %v285 = vpop.permute.xlu0 %284
  %v289 = vunpack.c.l.b16 %v271
  %v290 = vunpack.c.l.b16 %v272
  %v291 = vpack.c.b16 %v290, %v289
  %v293 = vsel %vm191, %v291, 0
  %295 = vmatprep.subr.bf16.mxu0 0
  %296 = vmatpush1.bf16.msra.mxu0 %v273
  %297 = vmatprep.subr.bf16.mxu0 0
  %298 = vmatpush1.bf16.msra.mxu0 %v274
  %299 = vmatprep.subr.bf16.mxu0 0
  %300 = vmatpush1.bf16.msra.mxu0 0
  %301 = vmatprep.subr.bf16.mxu0 0
  %302 = vmatpush1.bf16.msra.mxu0 0
  %303 = vmatprep.subr.bf16.mxu0 0
  %304 = vmatpush1.bf16.msra.mxu0 0
  %305 = vmatprep.subr.bf16.mxu0 0
  %306 = vmatpush1.bf16.msra.mxu0 0
  %307 = vmatprep.subr.bf16.mxu0 0
  %308 = vmatpush1.bf16.msra.mxu0 0
  %309 = vmatprep.subr.bf16.mxu0 0
  %310 = vmatpush1.bf16.msra.mxu0 0
  %311 = vmatprep.subr.bf16.mxu0 0
  %312 = vmatpush1.bf16.msra.mxu0 0
  %313 = vmatprep.subr.bf16.mxu0 0
  %314 = vmatpush1.bf16.msra.mxu0 0
  %315 = vmatprep.subr.bf16.mxu0 0
  %316 = vmatpush1.bf16.msra.mxu0 0
  %317 = vmatprep.subr.bf16.mxu0 0
  %318 = vmatpush1.bf16.msra.mxu0 0
  %319 = vmatprep.subr.bf16.mxu0 0
  %320 = vmatpush1.bf16.msra.mxu0 0
  %321 = vmatprep.subr.bf16.mxu0 0
  %322 = vmatpush1.bf16.msra.mxu0 0
  %323 = vmatprep.subr.bf16.mxu0 0
  %324 = vmatpush1.bf16.msra.mxu0 0
  %325 = vmatprep.subr.bf16.mxu0 0
  %326 = vmatpush1.bf16.msra.mxu0 0
  %327 = vmatprep.mubr.bf16.mxu0 0
  %328 = vmatmul.mubr.bf16.gmra.mrb[0].mxu0 %v293
  %v329 = vpop.f32.mrb[0].mxu0
  %v330 = vadd.f32 %v280, %v329
  %v331 = vpop.f32.mrb[0].mxu0
  %v332 = vpop.f32.mrb[0].mxu0
  %v333 = vadd.f32 %v285, %v332
  %v334 = vpop.f32.mrb[0].mxu0
  %335 = vdwg.mxu0
  %vm336 = vcmask 64512
  %v337 = vsel %vm336, %v333, -inf
  %v338 = vrot.slane %v337, 4
  %v339 = vmax.f32 %v337, %v338
  %v340 = vrot.slane %v339, 2
  %v341 = vmax.f32 %v339, %v340
  %v342 = vrot.slane %v341, 1
  %v343 = vmax.f32 %v341, %v342
  %v344 = vsub.f32 %v333, %v343
  %v345 = vmul.f32 %v344, 1.442695
  %v346 = vpow.pop %v345
  %v347 = vsel %vm336, %v346, 0.0
  %v348 = vrot.slane %v347, 4
  %v349 = vadd.f32 %v347, %v348
  %v350 = vrot.slane %v349, 2
  %v351 = vadd.f32 %v349, %v350
  %v352 = vrot.slane %v351, 1
  %v353 = vadd.f32 %v351, %v352
  %v354 = vrcp.pop %v353
  %v355 = vmul.f32 %v346, %v354
  %v356 = vlog2.pop %v353
  %v357 = vmul.f32 %v356, 0.6931472
  %v358 = vsub.f32 %v344, %v357
  %v359 = vld [vmem:[%s7] sm:$0xff]
  %v360 = vmul.f32 %v355, %v359
  %v361 = vadd.f32 %v330, %v360
  %v362 = vmul.f32 %v359, -0.5
  %v363 = vmul.f32 %v362, %v359
  %v364 = vsub.f32 %v363, %v358
  %v365 = vsub.f32 %v364, 0.9189385
  %v366 = vtanh.pop %v361
  %v367 = vtanh.pop %v366
  %v368 = vmul.f32 %v367, %v367
  %v369 = vsub.f32 1.0, %v368
  %v370 = vadd.f32 %v369, 1e-06
  %v371 = vlog2.pop %v370
  %v372 = vmul.f32 %v371, 0.6931472
  %v373 = vsub.f32 %v365, %v372
  %v374 = vmul.f32 %v366, 2.0
  %375 = vst.msk [vmem:[%s8] sm:$0xff] %vm336, %v374
  %376 = vst.msk [vmem:[%s8 + $0x8] sm:$0xff] %vm336, %v373
  // Predicated region
  $region34: #{tpu_custom_call.1} parent=0 // pred_check
    _
  $region35: #{tpu_custom_call.1} parent=0 // pred_check_branch
    %378 = sbr.rel (0) target = $region37
  $region36: #{tpu_custom_call.1} parent=0 // pred_region
    _
  $region37: #{tpu_custom_call.1} parent=0 // pred_fallthru
    _
  // Predicated region
  $region38: #{tpu_custom_call.1} parent=0 // pred_check
    _
  $region39: #{tpu_custom_call.1} parent=0 // pred_check_branch
    %380 = sbr.rel (0) target = $region41
  $region40: #{tpu_custom_call.1} parent=0 // pred_region
    _
  $region41: #{tpu_custom_call.1} parent=0 // pred_fallthru
    _

</llo_original>
